<compile_context>
chip_gen: v5e
topology: v5e:2x2
jax: 0.10.0
libtpu: 0.0.40
codegen_flags: <defaults>
</compile_context>

<pallas_src>
import functools

import jax
import jax.numpy as jnp
from jax import lax
from jax.experimental import pallas as pl
from jax.experimental.pallas import tpu as pltpu
import numpy as np


def _round_up(x, m):
    return (x + m - 1) // m * m


# ---------------------------------------------------------------------------
# Kernel 1: fused K|Q|V projection   kqv = x @ [wk | wq | wv]
# ---------------------------------------------------------------------------
def _qkv_proj_kernel(x_ref, w_ref, o_ref):
    # x_ref: (1, tile, Cp) bf16, w_ref: (Cp, 3*Hp) bf16, o_ref: (1, tile, 3*Hp) bf16
    o_ref[0] = jnp.dot(
        x_ref[0], w_ref[...], preferred_element_type=jnp.float32
    ).astype(o_ref.dtype)


# ---------------------------------------------------------------------------
# Kernel 2: causal flash attention with online softmax
# ---------------------------------------------------------------------------
def _flash_attn_kernel(k_ref, q_ref, v_ref, o_ref, m_sc, l_sc, acc_sc, *, scale):
    qi = pl.program_id(1)
    ki = pl.program_id(2)
    tq = q_ref.shape[1]
    tk = k_ref.shape[1]

    @pl.when(ki == 0)
    def _init():
        m_sc[...] = jnp.full(m_sc.shape, -jnp.inf, dtype=jnp.float32)
        l_sc[...] = jnp.zeros(l_sc.shape, dtype=jnp.float32)
        acc_sc[...] = jnp.zeros(acc_sc.shape, dtype=jnp.float32)

    # Skip kv tiles that lie entirely above the causal diagonal.
    @pl.when(ki * tk < (qi + 1) * tq)
    def _compute():
        q = q_ref[0]          # (tq, Hp) bf16
        k = k_ref[0]          # (tk, Hp) bf16
        v = v_ref[0]          # (tk, Hp) bf16

        # Scores: contract the head dims of q and k directly (no k.T materialization).
        s = lax.dot_general(
            q, k, dimension_numbers=(((1,), (1,)), ((), ())),
            preferred_element_type=jnp.float32) * scale            # (tq, tk) f32

        # Per-tile causal mask from global row/col indices.
        row = qi * tq + lax.broadcasted_iota(jnp.int32, (tq, tk), 0)
        col = ki * tk + lax.broadcasted_iota(jnp.int32, (tq, tk), 1)
        s = jnp.where(col <= row, s, -jnp.inf)

        # Online softmax update (all f32).
        m_prev = m_sc[...]
        m_new = jnp.maximum(m_prev, jnp.max(s, axis=-1, keepdims=True))
        alpha = jnp.exp(m_prev - m_new)
        p = jnp.exp(s - m_new)
        l_sc[...] = alpha * l_sc[...] + jnp.sum(p, axis=-1, keepdims=True)
        acc_sc[...] = alpha * acc_sc[...] + jnp.dot(
            p.astype(v.dtype), v, preferred_element_type=jnp.float32)
        m_sc[...] = m_new

    @pl.when(ki == pl.num_programs(2) - 1)
    def _finalize():
        inv_l = pl.reciprocal(l_sc[...], approx=True)
        o_ref[0] = (acc_sc[...] * inv_l).astype(o_ref.dtype)


def head_forward(x, w_key, w_query, w_value, *, block_t=256):
    """Single-head causal self-attention (eval mode, matching PyTorch `Head`).

    x:                     (B, T, C) float32
    w_key/w_query/w_value: nn.Linear weights, shape (head_size, C)  (y = x @ W.T)
    returns:               (B, T, head_size) float32
    """
    B, T, C = x.shape
    H = w_key.shape[0]
    scale = float(H) ** -0.5            # PyTorch uses k.shape[-1] ** -0.5 (original head_size)

    Hp = _round_up(H, 128)              # lane-dense head dim (128-multiple)
    Cp = _round_up(C, 128)              # aligned contraction dim
    tile = min(block_t, _round_up(T, 128))
    Tp = _round_up(T, tile)
    nt = Tp // tile

    # Packed, zero-padded projection weight (Cp, 3*Hp) = [k | q | v], bf16.
    def _prep(w):
        wt = jnp.asarray(w, jnp.float32).T                       # (C, H)
        return jnp.pad(wt, ((0, Cp - C), (0, Hp - H)))
    wkqv = jnp.concatenate(
        [_prep(w_key), _prep(w_query), _prep(w_value)], axis=1
    ).astype(jnp.bfloat16)                                       # (Cp, 3*Hp)

    # Padded bf16 activations. Padded key positions sit at indices >= T, so the
    # causal mask already excludes them for every real query row; padded query
    # rows are sliced off at the end.
    x_p = jnp.pad(x.astype(jnp.bfloat16), ((0, 0), (0, Tp - T), (0, Cp - C)))

    # --- fused QKV projection ------------------------------------------------
    proj_cost = pl.CostEstimate(
        flops=2 * B * Tp * Cp * 3 * Hp,
        transcendentals=0,
        bytes_accessed=x_p.size * 2 + wkqv.size * 2 + B * Tp * 3 * Hp * 2,
    )
    kqv = pl.pallas_call(
        _qkv_proj_kernel,
        out_shape=jax.ShapeDtypeStruct((B, Tp, 3 * Hp), jnp.bfloat16),
        grid=(B, nt),
        in_specs=[
            pl.BlockSpec((1, tile, Cp), lambda b, t: (b, t, 0)),
            pl.BlockSpec((Cp, 3 * Hp), lambda b, t: (0, 0)),
        ],
        out_specs=pl.BlockSpec((1, tile, 3 * Hp), lambda b, t: (b, t, 0)),
        compiler_params=pltpu.CompilerParams(
            dimension_semantics=("parallel", "parallel"),
            vmem_limit_bytes=32 * 1024 * 1024),
        cost_estimate=proj_cost,
    )(x_p, wkqv)

    # --- causal flash attention ------------------------------------------------
    attn_cost = pl.CostEstimate(
        flops=2 * B * Tp * Tp * Hp,                 # qk^T + p@v, ~halved by tile skip
        transcendentals=B * Tp * Tp // 2,
        bytes_accessed=B * Tp * Hp * 2 * (1 + 2 * nt) + B * Tp * Hp * 4,
    )
    out = pl.pallas_call(
        functools.partial(_flash_attn_kernel, scale=scale),
        out_shape=jax.ShapeDtypeStruct((B, Tp, Hp), jnp.float32),
        grid=(B, nt, nt),
        in_specs=[
            pl.BlockSpec((1, tile, Hp), lambda b, qi, ki: (b, ki, 0)),   # k slab
            pl.BlockSpec((1, tile, Hp), lambda b, qi, ki: (b, qi, 1)),   # q slab
            pl.BlockSpec((1, tile, Hp), lambda b, qi, ki: (b, ki, 2)),   # v slab
        ],
        out_specs=pl.BlockSpec((1, tile, Hp), lambda b, qi, ki: (b, qi, 0)),
        scratch_shapes=[
            pltpu.VMEM((tile, 1), jnp.float32),      # running max
            pltpu.VMEM((tile, 1), jnp.float32),      # running sum
            pltpu.VMEM((tile, Hp), jnp.float32),     # output accumulator
        ],
        compiler_params=pltpu.CompilerParams(
            dimension_semantics=("parallel", "parallel", "arbitrary"),
            vmem_limit_bytes=32 * 1024 * 1024),
        cost_estimate=attn_cost,
    )(kqv, kqv, kqv)

    return out[:, :T, :H]


def _reference(x, w_key, w_query, w_value):
    """Pure-JAX (f32) reference mirroring the PyTorch forward (eval mode)."""
    k = x @ w_key.T
    q = x @ w_query.T
    v = x @ w_value.T
    H = k.shape[-1]
    wei = (q @ jnp.swapaxes(k, -2, -1)) * H ** -0.5
    T = x.shape[1]
    tril = jnp.tril(jnp.ones((T, T)))
    wei = jnp.where(tril == 0, -jnp.inf, wei)
    wei = jax.nn.softmax(wei, axis=-1)
    return wei @ v


if __name__ == "__main__":
    # Small, module-consistent shapes: C=96 stands in for n_embd=650, head_size=16.
    # T=200 (not a tile multiple) exercises T/C padding, multi-tile online softmax,
    # and causal tile skipping.
    B, T, C, head_size = 2, 200, 96, 16

    key = jax.random.PRNGKey(0)
    kx, kk, kq, kv = jax.random.split(key, 4)
    x = jax.random.normal(kx, (B, T, C), dtype=jnp.float32)
    # nn.Linear(n_embd, head_size, bias=False) -> weight shape (head_size, n_embd)
    w_key = 0.05 * jax.random.normal(kk, (head_size, C), dtype=jnp.float32)
    w_query = 0.05 * jax.random.normal(kq, (head_size, C), dtype=jnp.float32)
    w_value = 0.05 * jax.random.normal(kv, (head_size, C), dtype=jnp.float32)

    out = head_forward(x, w_key, w_query, w_value, block_t=128)
    out = jax.block_until_ready(out)
    assert out.shape == (B, T, head_size)

    ref = _reference(x, w_key, w_query, w_value)
    # bf16 matmul inputs -> relaxed tolerance vs the f32 reference.
    np.testing.assert_allclose(np.asarray(out), np.asarray(ref), atol=2e-2, rtol=2e-2)

    print("KERNEL_OK")
</pallas_src>

<mosaic_0001>
module attributes {stable_mosaic.version = 11 : i64} {
  func.func @_qkv_proj_kernel(%arg0: i32, %arg1: i32, %arg2: memref<1x128x128xbf16, #tpu.memory_space<vmem>>, %arg3: memref<128x384xbf16, #tpu.memory_space<vmem>>, %arg4: memref<1x128x384xbf16, #tpu.memory_space<vmem>>) attributes {dimension_semantics = [#tpu.dimension_semantics<parallel>, #tpu.dimension_semantics<parallel>], iteration_bounds = array<i64: 2, 2>, scalar_prefetch = 0 : i64, scratch_operands = 0 : i64, tpu.core_type = #tpu.core_type<tc>, window_params = [{transform_indices = @transform_0, window_bounds = array<i64: 1, 128, 128>}, {pipeline_mode = #tpu.pipeline_mode<synchronous>, transform_indices = @transform_1, window_bounds = array<i64: 128, 384>}, {transform_indices = @transform_2, window_bounds = array<i64: 1, 128, 384>}]} {
    %c0 = arith.constant 0 : index
    %c0_0 = arith.constant 0 : index
    %c0_1 = arith.constant 0 : index
    %0 = vector.load %arg2[%c0, %c0_0, %c0_1] : memref<1x128x128xbf16, #tpu.memory_space<vmem>>, vector<1x128x128xbf16>
    %1 = vector.shape_cast %0 : vector<1x128x128xbf16> to vector<128x128xbf16>
    %c0_2 = arith.constant 0 : index
    %c0_3 = arith.constant 0 : index
    %2 = vector.load %arg3[%c0_2, %c0_3] : memref<128x384xbf16, #tpu.memory_space<vmem>>, vector<128x384xbf16>
    %cst = arith.constant dense<0.000000e+00> : vector<128x384xf32>
    %3 = tpu.matmul %1, %2, %cst {dimension_numbers = #tpu.dot_dimension_numbers<[1], [0], [0], [1], [0, 0, 1, 1], [], []>} : vector<128x128xbf16>, vector<128x384xbf16>, vector<128x384xf32> -> vector<128x384xf32>
    %4 = arith.truncf %3 : vector<128x384xf32> to vector<128x384xbf16>
    %c0_4 = arith.constant 0 : index
    %c0_5 = arith.constant 0 : index
    %c0_6 = arith.constant 0 : index
    %5 = vector.load %arg4[%c0_4, %c0_5, %c0_6] : memref<1x128x384xbf16, #tpu.memory_space<vmem>>, vector<1x128x384xbf16>
    %6 = vector.shape_cast %5 : vector<1x128x384xbf16> to vector<128x384xbf16>
    %7 = vector.shape_cast %4 : vector<128x384xbf16> to vector<1x128x384xbf16>
    tpu.vector_store %arg4[%c0_4, %c0_5, %c0_6], %7 {strides = array<i32>} : memref<1x128x384xbf16, #tpu.memory_space<vmem>>, vector<1x128x384xbf16>,
    return
  }
  func.func @transform_0(%arg0: i32, %arg1: i32) -> (i32, i32, i32) {
    %c0_i32 = arith.constant 0 : i32
    %c0_i32_0 = arith.constant 0 : i32
    return %arg0, %arg1, %c0_i32 : i32, i32, i32
  }
  func.func @transform_1(%arg0: i32, %arg1: i32) -> (i32, i32) {
    %c0_i32 = arith.constant 0 : i32
    %c0_i32_0 = arith.constant 0 : i32
    %c0_i32_1 = arith.constant 0 : i32
    return %c0_i32, %c0_i32_0 : i32, i32
  }
  func.func @transform_2(%arg0: i32, %arg1: i32) -> (i32, i32, i32) {
    %c0_i32 = arith.constant 0 : i32
    %c0_i32_0 = arith.constant 0 : i32
    return %arg0, %arg1, %c0_i32 : i32, i32, i32
  }
}

</mosaic_0001>

<llo_original>
// kernel: tpu_custom_call.1
$region0: #{tpu_custom_call.1}
  #allocation0 [shape = 'u32[]', space=smem, size = 0x4, offset = 0x4, fixed_abs, tag = 'smem constant byte address 0x4 - core index']
  #allocation1 [shape = 'u32[72,128]{1,0:T(1,128)}', space=vmem, size = 0x9000, scoped, tag = 'internal scratch']
  %s0 = inlined_call_operand.hbm [shape: bf16[2,256,128], index: 0, kind: input, shape index: {}]
  %s1 = inlined_call_operand.hbm [shape: bf16[128,384], index: 1, kind: input, shape index: {}]
  %s2 = inlined_call_operand.hbm [shape: bf16[2,256,384], index: 2, kind: output, shape index: {}]
  %s3 = sld [smem:[#allocation0]]
  $region49: #{tpu_custom_call.1} parent=0
    _
  %s5 = ssub.s32 1, %s3
  %s6 = scalar_select 0, %s5, %s3
  $region1: #{tpu_custom_call.1} parent=0
    #allocation2 [shape = 'u8[65536]{0}', space=vmem, size = 0x10000, scoped, tag = 'input window, operand 0']
    #allocation3 [shape = 's32[2]{0}', space=sflag, size = 0x8, scoped, tag = 'scoped memory for tpu_custom_call.1']
    #allocation4 [shape = 's32[2]{0}', space=sflag, size = 0x8, scoped, tag = 'scoped memory for tpu_custom_call.1']
    #allocation5 [shape = 'u8[98304]{0}', space=vmem, size = 0x18000, scoped, tag = 'input window, operand 1, single buffered']
    #allocation6 [shape = 's32[1]{0}', space=sflag, size = 0x4, scoped, tag = 'scoped memory for tpu_custom_call.1']
    #allocation7 [shape = 'u8[196608]{0}', space=vmem, size = 0x30000, scoped, tag = 'output window, operand 0']
    %7 = vsyncpa [#allocation3], 0
    %s8 = scalar_lea.sflag [#allocation3], 1
    %9 = vsyncpa %s8, 0
    %10 = vsyncpa [#allocation6], 0
    %11 = vsyncpa [#allocation4], 0
    %s12 = scalar_lea.sflag [#allocation4], 1
    %13 = vsyncpa %s12, 0
    loop: start=0, step=1, limit=6
    $region2: #{tpu_custom_call.1} parent=1 // loop_pre_header
      _
    $region3: #{tpu_custom_call.1} parent=1 // loop_header
      %s15 = sphi 0, %s19
      %p16 = scmp.ge.s32.totalorder %s15, 6
      %s22 = sphi 0, %s34
      %s23 = sphi 0, %s30
      %s24 = sphi 0, %s22
      %s25 = sphi 0, %s23
      %s26 = sphi 0, %s24
      %s27 = sphi 0, %s25
      %s39 = sphi 0, %s41
      %s42 = sphi 0, %s39
      %s43 = sphi 0, %s42
      %s59 = sphi 0, %s43
      %s63 = sphi 0, %s63
      %s65 = sphi 0, %s63
      %s66 = sphi 0, %s65
      %s80 = sphi 0, %s66
      %s88 = sphi 0, %s90
      %s91 = sphi 0, %s88
      %s92 = sphi 0, %s91
      %s108 = sphi 0, %s92
    $region4: #{tpu_custom_call.1} parent=1 // loop_header_branch
      %18 = sbr.rel (%p16) target = $region8
    $region5: #{tpu_custom_call.1} parent=1 // loop_body
      %s20 = ssub.s32 %s15, 1
      %s21 = ssub.s32 %s15, 2
      %s28 = sadd.s32 1, %s23
      %p29 = scmp.ge.s32.totalorder %s28, 2
      %s30 = scalar_select %p29, 0, %s28
      %s31 = sadd.s32 1, %s22
      %s32 = scalar_select %p29, %s31, %s22
      %p33 = scmp.ge.s32.totalorder %s32, 2
      %s34 = scalar_select %p33, 0, %s32
      %s35 = ssub.s32 %s22, %s34
      %s36 = ssub.s32 %s23, %s30
      %s37 = sor.u32 %s35, %s36
      %p38 = scmp.eq.s32.totalorder %s37, 0
      %s40 = sadd.s32 %s39, 1
      %s41 = scalar_select %p38, %s39, %s40
      %p44 = pneg %p38
      %p45 = scmp.eq.s32.totalorder %s15, 3
      %p46 = por %p44, %p45
      %p47 = scmp.ne.s32.totalorder %s39, %s42
      %p48 = scmp.eq.s32.totalorder %s15, 0
      %p49 = por %p47, %p48
      %p50 = scmp.ne.s32.totalorder %s39, %s42
      %p51 = scmp.eq.s32.totalorder %s20, 3
      %p52 = por %p50, %p51
      %p53 = scmp.ne.s32.totalorder %s42, %s43
      %p54 = scmp.eq.s32.totalorder %s20, 0
      %p55 = por %p53, %p54
      %p56 = scmp.ne.s32.totalorder %s42, %s43
      %p57 = scmp.eq.s32.totalorder %s21, 3
      %p58 = por %p56, %p57
      %p60 = scmp.ne.s32.totalorder %s43, %s59
      %p61 = scmp.eq.s32.totalorder %s21, 0
      %p62 = por %p60, %p61
      %s64 = sadd.s32 %s63, 1
      %p67 = scmp.eq.s32.totalorder %s15, 3
      %p68 = scmp.ne.s32.totalorder %s63, %s65
      %p69 = scmp.eq.s32.totalorder %s15, 0
      %p70 = por %p68, %p69
      %p71 = scmp.ne.s32.totalorder %s63, %s65
      %p72 = scmp.eq.s32.totalorder %s20, 3
      %p73 = por %p71, %p72
      %p74 = scmp.ne.s32.totalorder %s65, %s66
      %p75 = scmp.eq.s32.totalorder %s20, 0
      %p76 = por %p74, %p75
      %p77 = scmp.ne.s32.totalorder %s65, %s66
      %p78 = scmp.eq.s32.totalorder %s21, 3
      %p79 = por %p77, %p78
      %p81 = scmp.ne.s32.totalorder %s66, %s80
      %p82 = scmp.eq.s32.totalorder %s21, 0
      %p83 = por %p81, %p82
      %s84 = ssub.s32 %s22, %s34
      %s85 = ssub.s32 %s23, %s30
      %s86 = sor.u32 %s84, %s85
      %p87 = scmp.eq.s32.totalorder %s86, 0
      %s89 = sadd.s32 %s88, 1
      %s90 = scalar_select %p87, %s88, %s89
      %p93 = pneg %p87
      %p94 = scmp.eq.s32.totalorder %s15, 3
      %p95 = por %p93, %p94
      %p96 = scmp.ne.s32.totalorder %s88, %s91
      %p97 = scmp.eq.s32.totalorder %s15, 0
      %p98 = por %p96, %p97
      %p99 = scmp.ne.s32.totalorder %s88, %s91
      %p100 = scmp.eq.s32.totalorder %s20, 3
      %p101 = por %p99, %p100
      %p102 = scmp.ne.s32.totalorder %s91, %s92
      %p103 = scmp.eq.s32.totalorder %s20, 0
      %p104 = por %p102, %p103
      %p105 = scmp.ne.s32.totalorder %s91, %s92
      %p106 = scmp.eq.s32.totalorder %s21, 3
      %p107 = por %p105, %p106
      %p109 = scmp.ne.s32.totalorder %s92, %s108
      %p110 = scmp.eq.s32.totalorder %s21, 0
      %p111 = por %p109, %p110
      %p112 = scmp.le.s32.totalorder 1, %s15
      %p113 = scmp.lt.s32.totalorder %s15, 5
      %p114 = pnand %p112, %p113
      %p115 = pneg %p114
      // Predicated region
      $region9: #{tpu_custom_call.1} parent=5 // pred_check
        _
      $region10: #{tpu_custom_call.1} parent=5 // pred_check_branch
        %117 = sbr.rel (%p114) target = $region12
      $region11: #{tpu_custom_call.1} parent=5 // pred_region
        %s118 = ssub.s32 %s15, 1
        // Predicated region
        $region13: #{tpu_custom_call.1} parent=11 // pred_check
          %p119 = pneg %p76
        $region14: #{tpu_custom_call.1} parent=11 // pred_check_branch
          %121 = sbr.rel (%p119) target = $region16
        $region15: #{tpu_custom_call.1} parent=11 // pred_region
          %123 = vsyncadd [#allocation6], 0
          %s124 = sshll.u32 %s1, 4
          %s125 = int_to_ptr.hbm [resolvable:$true] %s124
          %s126 = sshll.u32 [#allocation5], 4
          %s127 = int_to_ptr.vmem [resolvable:$true] %s126
          %132 = dma.hbm_to_vmem [thread:$0]  %s125, 3072, %s127, [#allocation6], 192, 192, 12
        $region16: #{tpu_custom_call.1} parent=11 // pred_fallthru
          _
      $region12: #{tpu_custom_call.1} parent=5 // pred_fallthru
        _
      %p133 = scmp.lt.s32.totalorder %s15, 4
      // Predicated region
      $region17: #{tpu_custom_call.1} parent=5 // pred_check
        %p134 = pneg %p133
      $region18: #{tpu_custom_call.1} parent=5 // pred_check_branch
        %136 = sbr.rel (%p134) target = $region20
      $region19: #{tpu_custom_call.1} parent=5 // pred_region
        // Predicated region
        $region21: #{tpu_custom_call.1} parent=19 // pred_check
          %p137 = pneg %p49
        $region22: #{tpu_custom_call.1} parent=19 // pred_check_branch
          %139 = sbr.rel (%p137) target = $region24
        $region23: #{tpu_custom_call.1} parent=19 // pred_region
          %s140 = sand.u32 %s39, 1
          %s141 = scalar_lea.sflag [#allocation3], %s140
          %s142 = sand.u32 %s39, 1
          %s143 = smul.addr %s142, 64
          %s144 = scalar_lea.vmem [#allocation2], %s143
          %s145 = smul.u32 16, %s23
          %147 = vsyncadd %s141, 0
          %s148 = smul.addr %s22, 32
          %s149 = sadd.s32 %s145, %s148
          %s150 = smul.addr %s149, 4
          %s151 = scalar_lea.hbm %s0, %s150
          %s152 = sshll.u32 %s151, 4
          %s153 = int_to_ptr.hbm [resolvable:$true] %s152
          %s154 = sshll.u32 %s144, 4
          %s155 = int_to_ptr.vmem [resolvable:$true] %s154
          %160 = dma.hbm_to_vmem [thread:$0]  %s153, 1024, %s155, %s141, 64, 64, 4
        $region24: #{tpu_custom_call.1} parent=19 // pred_fallthru
          _
      $region20: #{tpu_custom_call.1} parent=5 // pred_fallthru
        _
      %p161 = scmp.le.s32.totalorder 1, %s15
      %p162 = scmp.lt.s32.totalorder %s15, 5
      %p163 = pnand %p161, %p162
      %p164 = pneg %p163
      // Predicated region
      $region25: #{tpu_custom_call.1} parent=5 // pred_check
        _
      $region26: #{tpu_custom_call.1} parent=5 // pred_check_branch
        %166 = sbr.rel (%p163) target = $region28
      $region27: #{tpu_custom_call.1} parent=5 // pred_region
        %s167 = ssub.s32 %s15, 1
        %s168 = sand.u32 %s42, 1
        %s169 = scalar_lea.sflag [#allocation3], %s168
        %s170 = sand.u32 %s42, 1
        %s171 = smul.addr %s170, 64
        %s172 = scalar_lea.vmem [#allocation2], %s171
        // Predicated region
        $region29: #{tpu_custom_call.1} parent=27 // pred_check
          %p173 = pneg %p55
        $region30: #{tpu_custom_call.1} parent=27 // pred_check_branch
          %175 = sbr.rel (%p173) target = $region32
        $region31: #{tpu_custom_call.1} parent=27 // pred_region
          %177 = dma.done %s169, 1024
        $region32: #{tpu_custom_call.1} parent=27 // pred_fallthru
          _
        // Predicated region
        $region33: #{tpu_custom_call.1} parent=27 // pred_check
          %p178 = pneg %p76
        $region34: #{tpu_custom_call.1} parent=27 // pred_check_branch
          %180 = sbr.rel (%p178) target = $region36
        $region35: #{tpu_custom_call.1} parent=27 // pred_region
          %182 = dma.done [#allocation6], 3072
        $region36: #{tpu_custom_call.1} parent=27 // pred_fallthru
          _
        %s183 = sand.u32 %s42, 1
        %s184 = scalar_lea.sflag [#allocation3], %s183
        %s185 = sand.u32 %s42, 1
        %s186 = smul.addr %s185, 64
        %s187 = scalar_lea.vmem [#allocation2], %s186
        %p188 = pneg %p55
        %p189 = pneg %p52
        %p190 = pneg %p76
        %p191 = pneg %p73
        %p192 = pneg %p104
        %p193 = pneg %p101
        %s194 = sand.u32 %s91, 1
        %s195 = scalar_lea.sflag [#allocation4], %s194
        %s196 = sand.u32 %s91, 1
        %s197 = smul.addr %s196, 192
        %s198 = scalar_lea.vmem [#allocation7], %s197
        %s199 = smul.u32 16, %s25
        %s200 = smul.u32 16, %s25
        %v201 = vld [vmem:[%s172] sm:$0xf]
        %v202 = vld [vmem:[%s172 + $0x4] sm:$0xf]
        %v203 = vld [vmem:[%s172 + $0x8] sm:$0xf]
        %v204 = vld [vmem:[%s172 + $0xc] sm:$0xf]
        %v205 = vld [vmem:[%s172 + $0x10] sm:$0xf]
        %v206 = vld [vmem:[%s172 + $0x14] sm:$0xf]
        %v207 = vld [vmem:[%s172 + $0x18] sm:$0xf]
        %v208 = vld [vmem:[%s172 + $0x1c] sm:$0xf]
        %v209 = vld [vmem:[%s172 + $0x20] sm:$0xf]
        %v210 = vld [vmem:[%s172 + $0x24] sm:$0xf]
        %v211 = vld [vmem:[%s172 + $0x28] sm:$0xf]
        %v212 = vld [vmem:[%s172 + $0x2c] sm:$0xf]
        %v213 = vld [vmem:[%s172 + $0x30] sm:$0xf]
        %v214 = vld [vmem:[%s172 + $0x34] sm:$0xf]
        %v215 = vld [vmem:[%s172 + $0x38] sm:$0xf]
        %v216 = vld [vmem:[%s172 + $0x3c] sm:$0xf]
        %v217 = vld [vmem:[#allocation5] sm:$0xff]
        %v218 = vld [vmem:[#allocation5 + $0x8] sm:$0xf]
        %v219 = vld [vmem:[#allocation5 + $0xc] sm:$0xff]
        %v220 = vld [vmem:[#allocation5 + $0x14] sm:$0xf]
        %v221 = vld [vmem:[#allocation5 + $0x18] sm:$0xff]
        %v222 = vld [vmem:[#allocation5 + $0x20] sm:$0xf]
        %v223 = vld [vmem:[#allocation5 + $0x24] sm:$0xff]
        %v224 = vld [vmem:[#allocation5 + $0x2c] sm:$0xf]
        %v225 = vld [vmem:[#allocation5 + $0x30] sm:$0xff]
        %v226 = vld [vmem:[#allocation5 + $0x38] sm:$0xf]
        %v227 = vld [vmem:[#allocation5 + $0x3c] sm:$0xff]
        %v228 = vld [vmem:[#allocation5 + $0x44] sm:$0xf]
        %v229 = vld [vmem:[#allocation5 + $0x48] sm:$0xff]
        %v230 = vld [vmem:[#allocation5 + $0x50] sm:$0xf]
        %v231 = vld [vmem:[#allocation5 + $0x54] sm:$0xff]
        %v232 = vld [vmem:[#allocation5 + $0x5c] sm:$0xf]
        %v233 = vld [vmem:[#allocation5 + $0x60] sm:$0xff]
        %v234 = vld [vmem:[#allocation5 + $0x68] sm:$0xf]
        %v235 = vld [vmem:[#allocation5 + $0x6c] sm:$0xff]
        %v236 = vld [vmem:[#allocation5 + $0x74] sm:$0xf]
        %v237 = vld [vmem:[#allocation5 + $0x78] sm:$0xff]
        %v238 = vld [vmem:[#allocation5 + $0x80] sm:$0xf]
        %v239 = vld [vmem:[#allocation5 + $0x84] sm:$0xff]
        %v240 = vld [vmem:[#allocation5 + $0x8c] sm:$0xf]
        %v241 = vld [vmem:[#allocation5 + $0x90] sm:$0xff]
        %v242 = vld [vmem:[#allocation5 + $0x98] sm:$0xf]
        %v243 = vld [vmem:[#allocation5 + $0x9c] sm:$0xff]
        %v244 = vld [vmem:[#allocation5 + $0xa4] sm:$0xf]
        %v245 = vld [vmem:[#allocation5 + $0xa8] sm:$0xff]
        %v246 = vld [vmem:[#allocation5 + $0xb0] sm:$0xf]
        %v247 = vld [vmem:[#allocation5 + $0xb4] sm:$0xff]
        %v248 = vld [vmem:[#allocation5 + $0xbc] sm:$0xf]
        %v265 = vunpack.c.l.b16 %v201
        %v266 = vunpack.c.l.b16 %v202
        %v267 = vunpack.c.l.b16 %v203
        %v268 = vunpack.c.l.b16 %v204
        %v269 = vunpack.c.l.b16 %v205
        %v270 = vunpack.c.l.b16 %v206
        %v271 = vunpack.c.l.b16 %v207
        %v272 = vunpack.c.l.b16 %v208
        %v273 = vunpack.c.l.b16 %v209
        %v274 = vunpack.c.l.b16 %v210
        %v275 = vunpack.c.l.b16 %v211
        %v276 = vunpack.c.l.b16 %v212
        %v277 = vunpack.c.l.b16 %v213
        %v278 = vunpack.c.l.b16 %v214
        %v279 = vunpack.c.l.b16 %v215
        %v280 = vunpack.c.l.b16 %v216
        %v281 = vpack.c.b16 %v266, %v265
        %v282 = vpack.c.b16 %v268, %v267
        %v283 = vpack.c.b16 %v270, %v269
        %v284 = vpack.c.b16 %v272, %v271
        %v285 = vpack.c.b16 %v274, %v273
        %v286 = vpack.c.b16 %v276, %v275
        %v287 = vpack.c.b16 %v278, %v277
        %v288 = vpack.c.b16 %v280, %v279
        %v329 = vunpack.c.l.b16 %v217
        %v330 = vunpack.c.h.b16 %v217
        %v331 = vunpack.c.l.b16 %v218
        %v332 = vunpack.c.l.b16 %v219
        %v333 = vunpack.c.h.b16 %v219
        %v334 = vunpack.c.l.b16 %v220
        %v335 = vunpack.c.l.b16 %v221
        %v336 = vunpack.c.h.b16 %v221
        %v337 = vunpack.c.l.b16 %v222
        %v338 = vunpack.c.l.b16 %v223
        %v339 = vunpack.c.h.b16 %v223
        %v340 = vunpack.c.l.b16 %v224
        %v341 = vunpack.c.l.b16 %v225
        %v342 = vunpack.c.h.b16 %v225
        %v343 = vunpack.c.l.b16 %v226
        %v344 = vunpack.c.l.b16 %v227
        %v345 = vunpack.c.h.b16 %v227
        %v346 = vunpack.c.l.b16 %v228
        %v347 = vunpack.c.l.b16 %v229
        %v348 = vunpack.c.h.b16 %v229
        %v349 = vunpack.c.l.b16 %v230
        %v350 = vunpack.c.l.b16 %v231
        %v351 = vunpack.c.h.b16 %v231
        %v352 = vunpack.c.l.b16 %v232
        %v353 = vunpack.c.l.b16 %v233
        %v354 = vunpack.c.h.b16 %v233
        %v355 = vunpack.c.l.b16 %v234
        %v356 = vunpack.c.l.b16 %v235
        %v357 = vunpack.c.h.b16 %v235
        %v358 = vunpack.c.l.b16 %v236
        %v359 = vunpack.c.l.b16 %v237
        %v360 = vunpack.c.h.b16 %v237
        %v361 = vunpack.c.l.b16 %v238
        %v362 = vunpack.c.l.b16 %v239
        %v363 = vunpack.c.h.b16 %v239
        %v364 = vunpack.c.l.b16 %v240
        %v365 = vunpack.c.l.b16 %v241
        %v366 = vunpack.c.h.b16 %v241
        %v367 = vunpack.c.l.b16 %v242
        %v368 = vunpack.c.l.b16 %v243
        %v369 = vunpack.c.h.b16 %v243
        %v370 = vunpack.c.l.b16 %v244
        %v371 = vunpack.c.l.b16 %v245
        %v372 = vunpack.c.h.b16 %v245
        %v373 = vunpack.c.l.b16 %v246
        %v374 = vunpack.c.l.b16 %v247
        %v375 = vunpack.c.h.b16 %v247
        %v376 = vunpack.c.l.b16 %v248
        %v377 = vpack.c.b16 %v332, %v329
        %v378 = vpack.c.b16 %v333, %v330
        %v379 = vpack.c.b16 %v334, %v331
        %v380 = vpack.c.b16 %v338, %v335
        %v381 = vpack.c.b16 %v339, %v336
        %v382 = vpack.c.b16 %v340, %v337
        %v383 = vpack.c.b16 %v344, %v341
        %v384 = vpack.c.b16 %v345, %v342
        %v385 = vpack.c.b16 %v346, %v343
        %v386 = vpack.c.b16 %v350, %v347
        %v387 = vpack.c.b16 %v351, %v348
        %v388 = vpack.c.b16 %v352, %v349
        %v389 = vpack.c.b16 %v356, %v353
        %v390 = vpack.c.b16 %v357, %v354
        %v391 = vpack.c.b16 %v358, %v355
        %v392 = vpack.c.b16 %v362, %v359
        %v393 = vpack.c.b16 %v363, %v360
        %v394 = vpack.c.b16 %v364, %v361
        %v395 = vpack.c.b16 %v368, %v365
        %v396 = vpack.c.b16 %v369, %v366
        %v397 = vpack.c.b16 %v370, %v367
        %v398 = vpack.c.b16 %v374, %v371
        %v399 = vpack.c.b16 %v375, %v372
        %v400 = vpack.c.b16 %v376, %v373
        %425 = vmatpush.bf16.msra.mxu0 %v398
        %426 = vmatpush.bf16.msra.mxu0 %v395
        %427 = vmatpush.bf16.msra.mxu0 %v392
        %428 = vmatpush.bf16.msra.mxu0 %v389
        %429 = vmatpush.bf16.msra.mxu0 %v386
        %430 = vmatpush.bf16.msra.mxu0 %v383
        %431 = vmatpush.bf16.msra.mxu0 %v380
        %432 = vmatpush.bf16.msra.mxu0 %v377
        %433 = vmatmul.bf16.gmra.mxu0 %v281
        %v434 = vpop.f32.mrf.mxu0
        %v435 = vadd.f32 0.0, %v434
        %v436 = vpop.f32.mrf.mxu0
        %v437 = vadd.f32 0.0, %v436
        %438 = vmatmul.bf16.gmra.mxu0 %v282
        %v439 = vpop.f32.mrf.mxu0
        %v440 = vadd.f32 0.0, %v439
        %v441 = vpop.f32.mrf.mxu0
        %v442 = vadd.f32 0.0, %v441
        %443 = vmatmul.bf16.gmra.mxu0 %v283
        %v444 = vpop.f32.mrf.mxu0
        %v445 = vadd.f32 0.0, %v444
        %v446 = vpop.f32.mrf.mxu0
        %v447 = vadd.f32 0.0, %v446
        %448 = vmatmul.bf16.gmra.mxu0 %v284
        %v449 = vpop.f32.mrf.mxu0
        %v450 = vadd.f32 0.0, %v449
        %v451 = vpop.f32.mrf.mxu0
        %v452 = vadd.f32 0.0, %v451
        %453 = vmatmul.bf16.gmra.mxu0 %v285
        %v454 = vpop.f32.mrf.mxu0
        %v455 = vadd.f32 0.0, %v454
        %v456 = vpop.f32.mrf.mxu0
        %v457 = vadd.f32 0.0, %v456
        %458 = vmatmul.bf16.gmra.mxu0 %v286
        %v459 = vpop.f32.mrf.mxu0
        %v460 = vadd.f32 0.0, %v459
        %v461 = vpop.f32.mrf.mxu0
        %v462 = vadd.f32 0.0, %v461
        %463 = vmatmul.bf16.gmra.mxu0 %v287
        %v464 = vpop.f32.mrf.mxu0
        %v465 = vadd.f32 0.0, %v464
        %v466 = vpop.f32.mrf.mxu0
        %v467 = vadd.f32 0.0, %v466
        %468 = vmatmul.bf16.gmra.mxu0 %v288
        %v469 = vpop.f32.mrf.mxu0
        %v470 = vadd.f32 0.0, %v469
        %v471 = vpop.f32.mrf.mxu0
        %v472 = vadd.f32 0.0, %v471
        %473 = vdwg.mxu0
        %474 = vmatpush.bf16.msra.mxu0 %v399
        %475 = vmatpush.bf16.msra.mxu0 %v396
        %476 = vmatpush.bf16.msra.mxu0 %v393
        %477 = vmatpush.bf16.msra.mxu0 %v390
        %478 = vmatpush.bf16.msra.mxu0 %v387
        %479 = vmatpush.bf16.msra.mxu0 %v384
        %480 = vmatpush.bf16.msra.mxu0 %v381
        %481 = vmatpush.bf16.msra.mxu0 %v378
        %482 = vmatmul.bf16.gmra.mxu0 %v281
        %v483 = vpop.f32.mrf.mxu0
        %v484 = vadd.f32 0.0, %v483
        %v485 = vpop.f32.mrf.mxu0
        %v486 = vadd.f32 0.0, %v485
        %487 = vmatmul.bf16.gmra.mxu0 %v282
        %v488 = vpop.f32.mrf.mxu0
        %v489 = vadd.f32 0.0, %v488
        %v490 = vpop.f32.mrf.mxu0
        %v491 = vadd.f32 0.0, %v490
        %492 = vmatmul.bf16.gmra.mxu0 %v283
        %v493 = vpop.f32.mrf.mxu0
        %v494 = vadd.f32 0.0, %v493
        %v495 = vpop.f32.mrf.mxu0
        %v496 = vadd.f32 0.0, %v495
        %497 = vmatmul.bf16.gmra.mxu0 %v284
        %v498 = vpop.f32.mrf.mxu0
        %v499 = vadd.f32 0.0, %v498
        %v500 = vpop.f32.mrf.mxu0
        %v501 = vadd.f32 0.0, %v500
        %502 = vmatmul.bf16.gmra.mxu0 %v285
        %v503 = vpop.f32.mrf.mxu0
        %v504 = vadd.f32 0.0, %v503
        %v505 = vpop.f32.mrf.mxu0
        %v506 = vadd.f32 0.0, %v505
        %507 = vmatmul.bf16.gmra.mxu0 %v286
        %v508 = vpop.f32.mrf.mxu0
        %v509 = vadd.f32 0.0, %v508
        %v510 = vpop.f32.mrf.mxu0
        %v511 = vadd.f32 0.0, %v510
        %512 = vmatmul.bf16.gmra.mxu0 %v287
        %v513 = vpop.f32.mrf.mxu0
        %v514 = vadd.f32 0.0, %v513
        %v515 = vpop.f32.mrf.mxu0
        %v516 = vadd.f32 0.0, %v515
        %517 = vmatmul.bf16.gmra.mxu0 %v288
        %v518 = vpop.f32.mrf.mxu0
        %v519 = vadd.f32 0.0, %v518
        %v520 = vpop.f32.mrf.mxu0
        %v521 = vadd.f32 0.0, %v520
        %522 = vdwg.mxu0
        %523 = vmatpush.bf16.msra.mxu0 %v400
        %524 = vmatpush.bf16.msra.mxu0 %v397
        %525 = vmatpush.bf16.msra.mxu0 %v394
        %526 = vmatpush.bf16.msra.mxu0 %v391
        %527 = vmatpush.bf16.msra.mxu0 %v388
        %528 = vmatpush.bf16.msra.mxu0 %v385
        %529 = vmatpush.bf16.msra.mxu0 %v382
        %530 = vmatpush.bf16.msra.mxu0 %v379
        %531 = vmatmul.bf16.gmra.mxu0 %v281
        %v532 = vpop.f32.mrf.mxu0
        %v533 = vadd.f32 0.0, %v532
        %v534 = vpop.f32.mrf.mxu0
        %v535 = vadd.f32 0.0, %v534
        %536 = vmatmul.bf16.gmra.mxu0 %v282
        %v537 = vpop.f32.mrf.mxu0
        %v538 = vadd.f32 0.0, %v537
        %v539 = vpop.f32.mrf.mxu0
        %v540 = vadd.f32 0.0, %v539
        %541 = vmatmul.bf16.gmra.mxu0 %v283
        %v542 = vpop.f32.mrf.mxu0
        %v543 = vadd.f32 0.0, %v542
        %v544 = vpop.f32.mrf.mxu0
        %v545 = vadd.f32 0.0, %v544
        %546 = vmatmul.bf16.gmra.mxu0 %v284
        %v547 = vpop.f32.mrf.mxu0
        %v548 = vadd.f32 0.0, %v547
        %v549 = vpop.f32.mrf.mxu0
        %v550 = vadd.f32 0.0, %v549
        %551 = vmatmul.bf16.gmra.mxu0 %v285
        %v552 = vpop.f32.mrf.mxu0
        %v553 = vadd.f32 0.0, %v552
        %v554 = vpop.f32.mrf.mxu0
        %v555 = vadd.f32 0.0, %v554
        %556 = vmatmul.bf16.gmra.mxu0 %v286
        %v557 = vpop.f32.mrf.mxu0
        %v558 = vadd.f32 0.0, %v557
        %v559 = vpop.f32.mrf.mxu0
        %v560 = vadd.f32 0.0, %v559
        %561 = vmatmul.bf16.gmra.mxu0 %v287
        %v562 = vpop.f32.mrf.mxu0
        %v563 = vadd.f32 0.0, %v562
        %v564 = vpop.f32.mrf.mxu0
        %v565 = vadd.f32 0.0, %v564
        %566 = vmatmul.bf16.gmra.mxu0 %v288
        %v567 = vpop.f32.mrf.mxu0
        %v568 = vadd.f32 0.0, %v567
        %v569 = vpop.f32.mrf.mxu0
        %v570 = vadd.f32 0.0, %v569
        %571 = vdwg.mxu0
        %v572 = vpack.c.bf16 %v484, %v435
        %v573 = vpack.c.bf16 %v533, %v533
        %v574 = vpack.c.bf16 %v486, %v437
        %v575 = vpack.c.bf16 %v535, %v535
        %v576 = vpack.c.bf16 %v489, %v440
        %v577 = vpack.c.bf16 %v538, %v538
        %v578 = vpack.c.bf16 %v491, %v442
        %v579 = vpack.c.bf16 %v540, %v540
        %v580 = vpack.c.bf16 %v494, %v445
        %v581 = vpack.c.bf16 %v543, %v543
        %v582 = vpack.c.bf16 %v496, %v447
        %v583 = vpack.c.bf16 %v545, %v545
        %v584 = vpack.c.bf16 %v499, %v450
        %v585 = vpack.c.bf16 %v548, %v548
        %v586 = vpack.c.bf16 %v501, %v452
        %v587 = vpack.c.bf16 %v550, %v550
        %v588 = vpack.c.bf16 %v504, %v455
        %v589 = vpack.c.bf16 %v553, %v553
        %v590 = vpack.c.bf16 %v506, %v457
        %v591 = vpack.c.bf16 %v555, %v555
        %v592 = vpack.c.bf16 %v509, %v460
        %v593 = vpack.c.bf16 %v558, %v558
        %v594 = vpack.c.bf16 %v511, %v462
        %v595 = vpack.c.bf16 %v560, %v560
        %v596 = vpack.c.bf16 %v514, %v465
        %v597 = vpack.c.bf16 %v563, %v563
        %v598 = vpack.c.bf16 %v516, %v467
        %v599 = vpack.c.bf16 %v565, %v565
        %v600 = vpack.c.bf16 %v519, %v470
        %v601 = vpack.c.bf16 %v568, %v568
        %v602 = vpack.c.bf16 %v521, %v472
        %v603 = vpack.c.bf16 %v570, %v570
        %604 = vst [vmem:[%s198] sm:$0xff] %v572
        %605 = vst [vmem:[%s198 + $0x8] sm:$0xf] %v573
        %606 = vst [vmem:[%s198 + $0xc] sm:$0xff] %v574
        %607 = vst [vmem:[%s198 + $0x14] sm:$0xf] %v575
        %608 = vst [vmem:[%s198 + $0x18] sm:$0xff] %v576
        %609 = vst [vmem:[%s198 + $0x20] sm:$0xf] %v577
        %610 = vst [vmem:[%s198 + $0x24] sm:$0xff] %v578
        %611 = vst [vmem:[%s198 + $0x2c] sm:$0xf] %v579
        %612 = vst [vmem:[%s198 + $0x30] sm:$0xff] %v580
        %613 = vst [vmem:[%s198 + $0x38] sm:$0xf] %v581
        %614 = vst [vmem:[%s198 + $0x3c] sm:$0xff] %v582
        %615 = vst [vmem:[%s198 + $0x44] sm:$0xf] %v583
        %616 = vst [vmem:[%s198 + $0x48] sm:$0xff] %v584
        %617 = vst [vmem:[%s198 + $0x50] sm:$0xf] %v585
        %618 = vst [vmem:[%s198 + $0x54] sm:$0xff] %v586
        %619 = vst [vmem:[%s198 + $0x5c] sm:$0xf] %v587
        %620 = vst [vmem:[%s198 + $0x60] sm:$0xff] %v588
        %621 = vst [vmem:[%s198 + $0x68] sm:$0xf] %v589
        %622 = vst [vmem:[%s198 + $0x6c] sm:$0xff] %v590
        %623 = vst [vmem:[%s198 + $0x74] sm:$0xf] %v591
        %624 = vst [vmem:[%s198 + $0x78] sm:$0xff] %v592
        %625 = vst [vmem:[%s198 + $0x80] sm:$0xf] %v593
        %626 = vst [vmem:[%s198 + $0x84] sm:$0xff] %v594
        %627 = vst [vmem:[%s198 + $0x8c] sm:$0xf] %v595
        %628 = vst [vmem:[%s198 + $0x90] sm:$0xff] %v596
        %629 = vst [vmem:[%s198 + $0x98] sm:$0xf] %v597
        %630 = vst [vmem:[%s198 + $0x9c] sm:$0xff] %v598
        %631 = vst [vmem:[%s198 + $0xa4] sm:$0xf] %v599
        %632 = vst [vmem:[%s198 + $0xa8] sm:$0xff] %v600
        %633 = vst [vmem:[%s198 + $0xb0] sm:$0xf] %v601
        %634 = vst [vmem:[%s198 + $0xb4] sm:$0xff] %v602
        %635 = vst [vmem:[%s198 + $0xbc] sm:$0xf] %v603
        %s636 = sand.u32 %s91, 1
        %s637 = scalar_lea.sflag [#allocation4], %s636
        %s638 = sand.u32 %s91, 1
        %s639 = smul.addr %s638, 192
        %s640 = scalar_lea.vmem [#allocation7], %s639
        // Predicated region
        $region37: #{tpu_custom_call.1} parent=27 // pred_check
          %p641 = pneg %p101
        $region38: #{tpu_custom_call.1} parent=27 // pred_check_branch
          %643 = sbr.rel (%p641) target = $region40
        $region39: #{tpu_custom_call.1} parent=27 // pred_region
          %s644 = smul.u32 16, %s25
          %646 = vsyncadd %s637, 0
          %s647 = smul.addr %s644, 3
          %s648 = smul.addr %s24, 96
          %s649 = sadd.s32 %s647, %s648
          %s650 = smul.addr %s649, 4
          %s651 = scalar_lea.hbm %s2, %s650
          %s652 = sshll.u32 %s640, 4
          %s653 = int_to_ptr.vmem [resolvable:$true] %s652
          %s654 = sshll.u32 %s651, 4
          %s655 = int_to_ptr.hbm [resolvable:$true] %s654
          %660 = dma.vmem_to_hbm [thread:$0]  %s653, 3072, %s655, %s637, 192, 192, 12
        $region40: #{tpu_custom_call.1} parent=27 // pred_fallthru
          _
      $region28: #{tpu_custom_call.1} parent=5 // pred_fallthru
        _
      %p661 = scmp.le.s32.totalorder 2, %s15
      // Predicated region
      $region41: #{tpu_custom_call.1} parent=5 // pred_check
        %p662 = pneg %p661
      $region42: #{tpu_custom_call.1} parent=5 // pred_check_branch
        %664 = sbr.rel (%p662) target = $region44
      $region43: #{tpu_custom_call.1} parent=5 // pred_region
        %s665 = ssub.s32 %s15, 2
        // Predicated region
        $region45: #{tpu_custom_call.1} parent=43 // pred_check
          %p666 = pneg %p107
        $region46: #{tpu_custom_call.1} parent=43 // pred_check_branch
          %668 = sbr.rel (%p666) target = $region48
        $region47: #{tpu_custom_call.1} parent=43 // pred_region
          %s669 = sand.u32 %s92, 1
          %s670 = scalar_lea.sflag [#allocation4], %s669
          %s671 = sand.u32 %s92, 1
          %s672 = smul.addr %s671, 192
          %s673 = scalar_lea.vmem [#allocation7], %s672
          %675 = dma.done %s670, 3072
        $region48: #{tpu_custom_call.1} parent=43 // pred_fallthru
          _
      $region44: #{tpu_custom_call.1} parent=5 // pred_fallthru
        _
    $region6: #{tpu_custom_call.1} parent=1 // loop_footer
      %s19 = sadd.s32 1, %s15
    $region7: #{tpu_custom_call.1} parent=1 // loop_footer_branch
      %14 = sbr.rel target = $region3
    $region8: #{tpu_custom_call.1} parent=1 // loop_exit
      _
    %676 = vsyncpa [#allocation3], 1
    %s677 = scalar_lea.sflag [#allocation3], 1
    %678 = vsyncpa %s677, 1
    %679 = vsyncpa [#allocation6], 1
    %680 = vsyncpa [#allocation4], 1
    %s681 = scalar_lea.sflag [#allocation4], 1
    %682 = vsyncpa %s681, 1

</llo_original>
